<compile_context>
chip_gen: v5e
topology: v5e:2x2
jax: 0.10.0
libtpu: 0.0.40
codegen_flags: <defaults>
</compile_context>

<pallas_src>
import jax
import jax.numpy as jnp
from jax.experimental import pallas as pl
from jax.experimental.pallas import tpu as pltpu


# ----------------------------- Pallas kernel --------------------------------

def zero_layer_kernel(x_ref, out_ref):
    # x_ref:   (1, Cin,  H*W)      one batch element, spatial on lanes
    # out_ref: (1, Cout, Hout*Wout)
    x = x_ref[...]
    # mean over channels and spatial dims of this batch element (keepdims so
    # it broadcasts cleanly against the output tile).
    x_mean = jnp.mean(x, keepdims=True)                      # (1, 1, 1)
    # padding (all zeros, possibly "upsampled" -> still zeros) * x_mean.
    zeros = jnp.zeros(out_ref.shape, out_ref.dtype)
    out_ref[...] = zeros * x_mean


# ----------------------------- wrapper ---------------------------------------

def zero_layer_forward(x_nchw, out_channels, stride, f_size=None):
    N, C, H, W = x_nchw.shape
    h_out, w_out = H // stride, W // stride
    if f_size is not None:
        # nn.Upsample(size=f_size, mode='bilinear', align_corners=True) applied
        # to an all-zeros tensor is all zeros -> just pick the output size.
        h_out, w_out = f_size

    hw_in = H * W
    hw_out = h_out * w_out

    # Free metadata reshape (no transpose): NCHW -> (N, C, H*W), spatial on lanes.
    x_flat = x_nchw.reshape(N, C, hw_in).astype(jnp.float32)

    out_flat = pl.pallas_call(
        zero_layer_kernel,
        out_shape=jax.ShapeDtypeStruct((N, out_channels, hw_out), jnp.float32),
        grid=(N,),
        in_specs=[pl.BlockSpec((1, C, hw_in), lambda n: (n, 0, 0))],
        out_specs=pl.BlockSpec((1, out_channels, hw_out), lambda n: (n, 0, 0)),
        compiler_params=pltpu.CompilerParams(
            dimension_semantics=("parallel",)),
    )(x_flat)

    # Free metadata reshape back to NCHW.
    return out_flat.reshape(N, out_channels, h_out, w_out)


# ----------------------------- main -------------------------------------------

if __name__ == "__main__":
    # Small shapes consistent with the module: NCHW input, stride 2, f_size set.
    N, Cin, Cout, H, W = 2, 4, 8, 16, 16
    stride = 2
    f_size = (16, 16)   # output spatial size after the (zero) upsample

    key = jax.random.PRNGKey(0)
    x = jax.random.normal(key, (N, Cin, H, W), jnp.float32)   # PyTorch NCHW

    out = zero_layer_forward(x, out_channels=Cout, stride=stride, f_size=f_size)
    out = jax.block_until_ready(out)

    # Reference semantics: zeros(N, Cout, *f_size) * per-batch mean == zeros.
    assert out.shape == (N, Cout, f_size[0], f_size[1])
    assert bool(jnp.all(jnp.isfinite(out)))
    assert bool(jnp.all(out == 0.0))

    # Also check the f_size=None path (output spatial = H//stride, W//stride).
    out2 = zero_layer_forward(x, out_channels=Cout, stride=stride, f_size=None)
    out2 = jax.block_until_ready(out2)
    assert out2.shape == (N, Cout, H // stride, W // stride)
    assert bool(jnp.all(out2 == 0.0))

    print("KERNEL_OK")
</pallas_src>

<mosaic_0001>
module attributes {stable_mosaic.version = 11 : i64} {
  func.func @zero_layer_kernel(%arg0: i32, %arg1: memref<1x4x256xf32, #tpu.memory_space<vmem>>, %arg2: memref<1x8x256xf32, #tpu.memory_space<vmem>>) attributes {dimension_semantics = [#tpu.dimension_semantics<parallel>], iteration_bounds = array<i64: 2>, scalar_prefetch = 0 : i64, scratch_operands = 0 : i64, tpu.core_type = #tpu.core_type<tc>, window_params = [{transform_indices = @transform_0, window_bounds = array<i64: 1, 4, 256>}, {transform_indices = @transform_1, window_bounds = array<i64: 1, 8, 256>}]} {
    %c0 = arith.constant 0 : index
    %c0_0 = arith.constant 0 : index
    %c0_1 = arith.constant 0 : index
    %0 = vector.load %arg1[%c0, %c0_0, %c0_1] : memref<1x4x256xf32, #tpu.memory_space<vmem>>, vector<1x4x256xf32>
    %1 = vector.shape_cast %0 : vector<1x4x256xf32> to vector<1x1x4x256xf32>
    %cst = arith.constant dense<0.000000e+00> : vector<1xf32>
    %2 = vector.multi_reduction <add>, %1, %cst [1, 2, 3] : vector<1x1x4x256xf32> to vector<1xf32>
    %3 = vector.shape_cast %2 : vector<1xf32> to vector<1x1x1x1xf32>
    %4 = vector.extract %3[0, 0, 0, 0] : f32 from vector<1x1x1x1xf32>
    %5 = vector.broadcast %4 : f32 to vector<1x1x1xf32>
    %cst_2 = arith.constant 1.024000e+03 : f32
    %6 = vector.broadcast %cst_2 : f32 to vector<1x1x1xf32>
    %7 = arith.divf %5, %6 : vector<1x1x1xf32>
    %cst_3 = arith.constant 0.000000e+00 : f32
    %8 = vector.broadcast %cst_3 : f32 to vector<1x8x256xf32>
    %9 = vector.broadcast %7 : vector<1x1x1xf32> to vector<1x8x256xf32>
    %10 = arith.mulf %8, %9 : vector<1x8x256xf32>
    %c0_4 = arith.constant 0 : index
    %c0_5 = arith.constant 0 : index
    %c0_6 = arith.constant 0 : index
    %11 = vector.load %arg2[%c0_4, %c0_5, %c0_6] : memref<1x8x256xf32, #tpu.memory_space<vmem>>, vector<1x8x256xf32>
    tpu.vector_store %arg2[%c0_4, %c0_5, %c0_6], %10 {strides = array<i32>} : memref<1x8x256xf32, #tpu.memory_space<vmem>>, vector<1x8x256xf32>,
    return
  }
  func.func @transform_0(%arg0: i32) -> (i32, i32, i32) {
    %c0_i32 = arith.constant 0 : i32
    %c0_i32_0 = arith.constant 0 : i32
    %c0_i32_1 = arith.constant 0 : i32
    return %arg0, %c0_i32, %c0_i32_0 : i32, i32, i32
  }
  func.func @transform_1(%arg0: i32) -> (i32, i32, i32) {
    %c0_i32 = arith.constant 0 : i32
    %c0_i32_0 = arith.constant 0 : i32
    %c0_i32_1 = arith.constant 0 : i32
    return %arg0, %c0_i32, %c0_i32_0 : i32, i32, i32
  }
}

</mosaic_0001>

<llo_original>
// kernel: tpu_custom_call.1
$region0: #{tpu_custom_call.1}
  #allocation0 [shape = 'u32[]', space=smem, size = 0x4, offset = 0x4, fixed_abs, tag = 'smem constant byte address 0x4 - core index']
  #allocation1 [shape = 'u32[72,128]{1,0:T(1,128)}', space=vmem, size = 0x9000, scoped, tag = 'internal scratch']
  %s0 = inlined_call_operand.hbm [shape: f32[2,4,256], index: 0, kind: input, shape index: {}]
  %s1 = inlined_call_operand.hbm [shape: f32[2,8,256], index: 1, kind: output, shape index: {}]
  %s2 = sld [smem:[#allocation0]]
  $region41: #{tpu_custom_call.1} parent=0
    _
  %s4 = ssub.s32 1, %s2
  %s5 = scalar_select 0, %s4, %s2
  $region1: #{tpu_custom_call.1} parent=0
    #allocation2 [shape = 'u8[8192]{0}', space=vmem, size = 0x2000, scoped, tag = 'input window, operand 0']
    #allocation3 [shape = 's32[2]{0}', space=sflag, size = 0x8, scoped, tag = 'scoped memory for tpu_custom_call.1']
    #allocation4 [shape = 's32[2]{0}', space=sflag, size = 0x8, scoped, tag = 'scoped memory for tpu_custom_call.1']
    #allocation5 [shape = 'u8[16384]{0}', space=vmem, size = 0x4000, scoped, tag = 'output window, operand 0']
    %6 = vsyncpa [#allocation3], 0
    %s7 = scalar_lea.sflag [#allocation3], 1
    %8 = vsyncpa %s7, 0
    %9 = vsyncpa [#allocation4], 0
    %s10 = scalar_lea.sflag [#allocation4], 1
    %11 = vsyncpa %s10, 0
    loop: start=0, step=1, limit=4
    $region2: #{tpu_custom_call.1} parent=1 // loop_pre_header
      _
    $region3: #{tpu_custom_call.1} parent=1 // loop_header
      %s13 = sphi 0, %s17
      %p14 = scmp.ge.s32.totalorder %s13, 4
      %s23 = sphi 0, %s25
      %s26 = sphi 0, %s23
      %s27 = sphi 0, %s26
      %s43 = sphi 0, %s27
      %s49 = sphi 0, %s51
      %s52 = sphi 0, %s49
      %s53 = sphi 0, %s52
      %s69 = sphi 0, %s53
    $region4: #{tpu_custom_call.1} parent=1 // loop_header_branch
      %16 = sbr.rel (%p14) target = $region8
    $region5: #{tpu_custom_call.1} parent=1 // loop_body
      %s18 = ssub.s32 %s13, 1
      %s19 = ssub.s32 %s13, 2
      %s20 = sadd.s32 %s13, 1
      %s21 = ssub.s32 %s13, %s20
      %p22 = scmp.eq.s32.totalorder %s21, 0
      %s24 = sadd.s32 %s23, 1
      %s25 = scalar_select %p22, %s23, %s24
      %p28 = pneg %p22
      %p29 = scmp.eq.s32.totalorder %s13, 1
      %p30 = por %p28, %p29
      %p31 = scmp.ne.s32.totalorder %s23, %s26
      %p32 = scmp.eq.s32.totalorder %s13, 0
      %p33 = por %p31, %p32
      %p34 = scmp.ne.s32.totalorder %s23, %s26
      %p35 = scmp.eq.s32.totalorder %s18, 1
      %p36 = por %p34, %p35
      %p37 = scmp.ne.s32.totalorder %s26, %s27
      %p38 = scmp.eq.s32.totalorder %s18, 0
      %p39 = por %p37, %p38
      %p40 = scmp.ne.s32.totalorder %s26, %s27
      %p41 = scmp.eq.s32.totalorder %s19, 1
      %p42 = por %p40, %p41
      %p44 = scmp.ne.s32.totalorder %s27, %s43
      %p45 = scmp.eq.s32.totalorder %s19, 0
      %p46 = por %p44, %p45
      %s47 = ssub.s32 %s13, %s20
      %p48 = scmp.eq.s32.totalorder %s47, 0
      %s50 = sadd.s32 %s49, 1
      %s51 = scalar_select %p48, %s49, %s50
      %p54 = pneg %p48
      %p55 = scmp.eq.s32.totalorder %s13, 1
      %p56 = por %p54, %p55
      %p57 = scmp.ne.s32.totalorder %s49, %s52
      %p58 = scmp.eq.s32.totalorder %s13, 0
      %p59 = por %p57, %p58
      %p60 = scmp.ne.s32.totalorder %s49, %s52
      %p61 = scmp.eq.s32.totalorder %s18, 1
      %p62 = por %p60, %p61
      %p63 = scmp.ne.s32.totalorder %s52, %s53
      %p64 = scmp.eq.s32.totalorder %s18, 0
      %p65 = por %p63, %p64
      %p66 = scmp.ne.s32.totalorder %s52, %s53
      %p67 = scmp.eq.s32.totalorder %s19, 1
      %p68 = por %p66, %p67
      %p70 = scmp.ne.s32.totalorder %s53, %s69
      %p71 = scmp.eq.s32.totalorder %s19, 0
      %p72 = por %p70, %p71
      %p73 = scmp.le.s32.totalorder 1, %s13
      %p74 = scmp.lt.s32.totalorder %s13, 3
      %p75 = pnand %p73, %p74
      %p76 = pneg %p75
      // Predicated region
      $region9: #{tpu_custom_call.1} parent=5 // pred_check
        _
      $region10: #{tpu_custom_call.1} parent=5 // pred_check_branch
        %78 = sbr.rel (%p75) target = $region12
      $region11: #{tpu_custom_call.1} parent=5 // pred_region
        %s79 = ssub.s32 %s13, 1
      $region12: #{tpu_custom_call.1} parent=5 // pred_fallthru
        _
      %p80 = scmp.lt.s32.totalorder %s13, 2
      // Predicated region
      $region13: #{tpu_custom_call.1} parent=5 // pred_check
        %p81 = pneg %p80
      $region14: #{tpu_custom_call.1} parent=5 // pred_check_branch
        %83 = sbr.rel (%p81) target = $region16
      $region15: #{tpu_custom_call.1} parent=5 // pred_region
        // Predicated region
        $region17: #{tpu_custom_call.1} parent=15 // pred_check
          %p84 = pneg %p33
        $region18: #{tpu_custom_call.1} parent=15 // pred_check_branch
          %86 = sbr.rel (%p84) target = $region20
        $region19: #{tpu_custom_call.1} parent=15 // pred_region
          %s87 = sand.u32 %s23, 1
          %s88 = scalar_lea.sflag [#allocation3], %s87
          %s89 = sand.u32 %s23, 1
          %s90 = smul.addr %s89, 8
          %s91 = scalar_lea.vmem [#allocation2], %s90
          %93 = vsyncadd %s88, 0
          %s94 = smul.addr %s13, 2
          %s95 = smul.addr %s94, 4
          %s96 = scalar_lea.hbm %s0, %s95
          %s98 = sshll.u32 %s96, 4
          %s99 = int_to_ptr.hbm [resolvable:$true] %s98
          %s100 = sshll.u32 %s91, 4
          %s101 = int_to_ptr.vmem [resolvable:$true] %s100
          %103 = dma.hbm_to_vmem [thread:$0]  %s99, 128, %s101, %s88
        $region20: #{tpu_custom_call.1} parent=15 // pred_fallthru
          _
      $region16: #{tpu_custom_call.1} parent=5 // pred_fallthru
        _
      %p104 = scmp.le.s32.totalorder 1, %s13
      %p105 = scmp.lt.s32.totalorder %s13, 3
      %p106 = pnand %p104, %p105
      %p107 = pneg %p106
      // Predicated region
      $region21: #{tpu_custom_call.1} parent=5 // pred_check
        _
      $region22: #{tpu_custom_call.1} parent=5 // pred_check_branch
        %109 = sbr.rel (%p106) target = $region24
      $region23: #{tpu_custom_call.1} parent=5 // pred_region
        %s110 = ssub.s32 %s13, 1
        %s111 = sand.u32 %s26, 1
        %s112 = scalar_lea.sflag [#allocation3], %s111
        %s113 = sand.u32 %s26, 1
        %s114 = smul.addr %s113, 8
        %s115 = scalar_lea.vmem [#allocation2], %s114
        // Predicated region
        $region25: #{tpu_custom_call.1} parent=23 // pred_check
          %p116 = pneg %p39
        $region26: #{tpu_custom_call.1} parent=23 // pred_check_branch
          %118 = sbr.rel (%p116) target = $region28
        $region27: #{tpu_custom_call.1} parent=23 // pred_region
          %120 = dma.done %s112, 128
        $region28: #{tpu_custom_call.1} parent=23 // pred_fallthru
          _
        %s121 = sand.u32 %s26, 1
        %s122 = scalar_lea.sflag [#allocation3], %s121
        %s123 = sand.u32 %s26, 1
        %s124 = smul.addr %s123, 8
        %s125 = scalar_lea.vmem [#allocation2], %s124
        %p126 = pneg %p39
        %p127 = pneg %p36
        %p128 = pneg %p65
        %p129 = pneg %p62
        %s130 = sand.u32 %s52, 1
        %s131 = scalar_lea.sflag [#allocation4], %s130
        %s132 = sand.u32 %s52, 1
        %s133 = smul.addr %s132, 16
        %s134 = scalar_lea.vmem [#allocation5], %s133
        %v135 = vld [vmem:[%s115] sm:$0xff]
        %137 = vst [vmem:[#allocation1] ss:$2 sm:$0xff] %v135
        %v138 = vld.sshfl [vmem:[#allocation1] sm:$0xff pattern:$0x75316420]
        %v139 = vld.sshfl [vmem:[#allocation1 + $0x8] sm:$0xff pattern:$0x75316420]
        %vm142 = vcmask 1043456
        %v143 = vsel %vm142, %v138, 0.0
        %v144 = vsel %vm142, %v139, 0.0
        %v145 = vadd.f32 %v143, %v144
        %146 = vadd.xlane.f32.xlu0 %v145
        %v147 = vpop.xlane.xlu0 %146
        %v148 = vrot.slane %v147, 4
        %v149 = vadd.f32 %v147, %v148
        %v150 = vrot.slane %v149, 2
        %v151 = vadd.f32 %v149, %v150
        %v152 = vrot.slane %v151, 1
        %v153 = vadd.f32 %v151, %v152
        %s154 = vtos %v153
        %v155 = vstv %s154
        %v156 = vrcp.pop 1024.0
        %v157 = vmul.f32 1024.0, %v156
        %v158 = vsub.f32 1.0, %v157
        %v159 = vmul.f32 %v156, %v158
        %v160 = vadd.f32 %v156, %v159
        %vm161 = vweird.f32 %v156
        %v162 = vsel %vm161, %v156, %v160
        %v163 = vmul.f32 %v155, %v162
        %v164 = vmul.f32 %v163, 0.0
        %165 = vst [vmem:[%s134] sm:$0xff] %v164
        %166 = vst [vmem:[%s134 + $0x8] sm:$0xff] %v164
        %s167 = sand.u32 %s52, 1
        %s168 = scalar_lea.sflag [#allocation4], %s167
        %s169 = sand.u32 %s52, 1
        %s170 = smul.addr %s169, 16
        %s171 = scalar_lea.vmem [#allocation5], %s170
        // Predicated region
        $region29: #{tpu_custom_call.1} parent=23 // pred_check
          %p172 = pneg %p62
        $region30: #{tpu_custom_call.1} parent=23 // pred_check_branch
          %174 = sbr.rel (%p172) target = $region32
        $region31: #{tpu_custom_call.1} parent=23 // pred_region
          %176 = vsyncadd %s168, 0
          %s177 = smul.addr %s18, 2
          %s178 = smul.addr %s177, 8
          %s179 = scalar_lea.hbm %s1, %s178
          %s181 = sshll.u32 %s171, 4
          %s182 = int_to_ptr.vmem [resolvable:$true] %s181
          %s183 = sshll.u32 %s179, 4
          %s184 = int_to_ptr.hbm [resolvable:$true] %s183
          %186 = dma.vmem_to_hbm [thread:$0]  %s182, 256, %s184, %s168
        $region32: #{tpu_custom_call.1} parent=23 // pred_fallthru
          _
      $region24: #{tpu_custom_call.1} parent=5 // pred_fallthru
        _
      %p187 = scmp.le.s32.totalorder 2, %s13
      // Predicated region
      $region33: #{tpu_custom_call.1} parent=5 // pred_check
        %p188 = pneg %p187
      $region34: #{tpu_custom_call.1} parent=5 // pred_check_branch
        %190 = sbr.rel (%p188) target = $region36
      $region35: #{tpu_custom_call.1} parent=5 // pred_region
        %s191 = ssub.s32 %s13, 2
        // Predicated region
        $region37: #{tpu_custom_call.1} parent=35 // pred_check
          %p192 = pneg %p68
        $region38: #{tpu_custom_call.1} parent=35 // pred_check_branch
          %194 = sbr.rel (%p192) target = $region40
        $region39: #{tpu_custom_call.1} parent=35 // pred_region
          %s195 = sand.u32 %s53, 1
          %s196 = scalar_lea.sflag [#allocation4], %s195
          %s197 = sand.u32 %s53, 1
          %s198 = smul.addr %s197, 16
          %s199 = scalar_lea.vmem [#allocation5], %s198
          %201 = dma.done %s196, 256
        $region40: #{tpu_custom_call.1} parent=35 // pred_fallthru
          _
      $region36: #{tpu_custom_call.1} parent=5 // pred_fallthru
        _
    $region6: #{tpu_custom_call.1} parent=1 // loop_footer
      %s17 = sadd.s32 1, %s13
    $region7: #{tpu_custom_call.1} parent=1 // loop_footer_branch
      %12 = sbr.rel target = $region3
    $region8: #{tpu_custom_call.1} parent=1 // loop_exit
      _
    %202 = vsyncpa [#allocation3], 1
    %s203 = scalar_lea.sflag [#allocation3], 1
    %204 = vsyncpa %s203, 1
    %205 = vsyncpa [#allocation4], 1
    %s206 = scalar_lea.sflag [#allocation4], 1
    %207 = vsyncpa %s206, 1

</llo_original>
